<compile_context>
chip_gen: v6e
topology: v6e:2x2x1
jax: 0.10.0
libtpu: 0.0.40
codegen_flags: <defaults>
</compile_context>

<pallas_src>
import functools

import jax
import jax.numpy as jnp
import numpy as np
from jax.experimental import pallas as pl
from jax.experimental.pallas import tpu as pltpu


def chebconv_kernel(l_ref, x0_ref, wblk_ref, b_ref, o_ref, *, K):
    """Full ChebConv forward for one (small) graph.

    l_ref   : (N, N)                 graph Laplacian
    x0_ref  : (N, B*Fin)             permuted/flattened input signal
    wblk_ref: (K, B*Fin, B*Cout)     per-order block-diagonal FC weights
    b_ref   : (1, B*Cout)            bias, tiled across batch
    o_ref   : (N, B*Cout)            lane-dense output slab
    """
    L = l_ref[...]                   # (N, N)
    x0 = x0_ref[...]                 # (N, B*Fin)

    # k = 0 term; bias folded into the accumulator (one broadcast-add total).
    acc = jnp.dot(x0, wblk_ref[0], preferred_element_type=jnp.float32) + b_ref[...]

    # Chebyshev polynomial recurrence on the Laplacian (MXU matmuls), fused
    # with one block-diagonal FC matmul per order.
    Tx0 = x0
    Tx1 = x0
    if K > 1:
        Tx1 = jnp.dot(L, x0, preferred_element_type=jnp.float32)
        acc = acc + jnp.dot(Tx1, wblk_ref[1], preferred_element_type=jnp.float32)
    for k in range(2, K):
        Tx2 = 2.0 * jnp.dot(L, Tx1, preferred_element_type=jnp.float32) - Tx0
        acc = acc + jnp.dot(Tx2, wblk_ref[k], preferred_element_type=jnp.float32)
        Tx0, Tx1 = Tx1, Tx2

    # Single lane-dense store (B*Cout lanes instead of B masked Cout-wide stores).
    o_ref[...] = acc.astype(o_ref.dtype)


def chebconv_forward(x, laplacian, weight, bias, K):
    """x: (B, N, Fin); laplacian: (N, N); weight: (Cout, K*Fin); bias: (Cout,)."""
    B, N, Fin = x.shape
    Cout = weight.shape[0]

    # Glue: same permute/reshape the torch module does before the matmuls.
    x0 = jnp.transpose(x, (1, 0, 2)).reshape(N, B * Fin)          # (N, B*Fin)

    # Per-order block-diagonal weights:
    #   w_blk[k, b*Fin+f, b'*Cout+c] = delta(b, b') * W[c, k*Fin+f]
    wk = weight.reshape(Cout, K, Fin).transpose(1, 2, 0)          # (K, Fin, Cout)
    eye_b = jnp.eye(B, dtype=weight.dtype)
    w_blk = jnp.einsum("bd,kfc->kbfdc", eye_b, wk).reshape(K, B * Fin, B * Cout)

    # Bias tiled across batch so it matches the (N, B*Cout) accumulator lanes.
    bias_row = jnp.tile(bias, B).reshape(1, B * Cout)

    kernel = functools.partial(chebconv_kernel, K=K)
    vmem = pl.BlockSpec(memory_space=pltpu.MemorySpace.VMEM)
    out_flat = pl.pallas_call(
        kernel,
        out_shape=jax.ShapeDtypeStruct((N, B * Cout), jnp.float32),
        in_specs=[vmem, vmem, vmem, vmem],
        out_specs=vmem,
    )(laplacian, x0, w_blk, bias_row)

    # Wrapper-side layout fixup back to the torch module's (B, N, Cout).
    return jnp.transpose(out_flat.reshape(N, B, Cout), (1, 0, 2))


def chebconv_ref(x, laplacian, weight, bias, K):
    """Pure-JAX reference mirroring the PyTorch forward line-by-line."""
    B, N, Fin = x.shape
    x0 = jnp.transpose(x, (1, 0, 2)).reshape(N, B * Fin)
    outs = [x0]
    Tx0 = x0
    Tx1 = x0
    if K > 1:
        Tx1 = laplacian @ x0
        outs.append(Tx1)
    for _ in range(2, K):
        Tx2 = 2.0 * (laplacian @ Tx1) - Tx0
        outs.append(Tx2)
        Tx0, Tx1 = Tx1, Tx2
    outs = [o.reshape(N, B, Fin) for o in outs]
    out = jnp.concatenate(outs, axis=2).reshape(N * B, K * Fin)
    out = out @ weight.T + bias
    return jnp.transpose(out.reshape(N, B, -1), (1, 0, 2))


if __name__ == "__main__":
    # Small, deterministic problem consistent with the module's forward.
    B, N, Fin, Cout, K = 2, 64, 8, 16, 3

    key = jax.random.PRNGKey(0)
    kx, kl, kw = jax.random.split(key, 3)

    x = jax.random.normal(kx, (B, N, Fin), dtype=jnp.float32)

    # Deterministic "Laplacian": symmetric, mildly scaled (synthetic).
    a = jax.random.normal(kl, (N, N), dtype=jnp.float32)
    laplacian = (a + a.T) / (2.0 * jnp.sqrt(jnp.float32(N)))

    # fc = nn.Linear(K*Fin, Cout), xavier_normal_(gain=relu gain), zero bias.
    gain = float(np.sqrt(2.0))  # calculate_gain('relu')
    fan_in, fan_out = K * Fin, Cout
    std = gain * float(np.sqrt(2.0 / (fan_in + fan_out)))
    weight = std * jax.random.normal(kw, (Cout, K * Fin), dtype=jnp.float32)
    bias = jnp.zeros((Cout,), dtype=jnp.float32)

    out = chebconv_forward(x, laplacian, weight, bias, K)
    out = jax.block_until_ready(out)

    ref = chebconv_ref(x, laplacian, weight, bias, K)
    assert out.shape == (B, N, Cout)
    np.testing.assert_allclose(np.asarray(out), np.asarray(ref), rtol=1e-4, atol=1e-4)

    print("KERNEL_OK")
</pallas_src>

<mosaic_0001>
module attributes {stable_mosaic.version = 11 : i64} {
  func.func @chebconv_kernel(%arg0: memref<64x64xf32, #tpu.memory_space<vmem>>, %arg1: memref<64x16xf32, #tpu.memory_space<vmem>>, %arg2: memref<3x16x32xf32, #tpu.memory_space<vmem>>, %arg3: memref<1x32xf32, #tpu.memory_space<vmem>>, %arg4: memref<64x32xf32, #tpu.memory_space<vmem>>) attributes {dimension_semantics = [], scalar_prefetch = 0 : i64, scratch_operands = 0 : i64, tpu.core_type = #tpu.core_type<tc>} {
    %c0 = arith.constant 0 : index
    %c0_0 = arith.constant 0 : index
    %0 = vector.load %arg0[%c0, %c0_0] : memref<64x64xf32, #tpu.memory_space<vmem>>, vector<64x64xf32>
    %c0_1 = arith.constant 0 : index
    %c0_2 = arith.constant 0 : index
    %1 = vector.load %arg1[%c0_1, %c0_2] : memref<64x16xf32, #tpu.memory_space<vmem>>, vector<64x16xf32>
    %c0_3 = arith.constant 0 : index
    %c0_4 = arith.constant 0 : index
    %c0_5 = arith.constant 0 : index
    %2 = vector.load %arg2[%c0_3, %c0_4, %c0_5] : memref<3x16x32xf32, #tpu.memory_space<vmem>>, vector<1x16x32xf32>
    %3 = vector.shape_cast %2 : vector<1x16x32xf32> to vector<16x32xf32>
    %cst = arith.constant dense<0.000000e+00> : vector<64x32xf32>
    %4 = tpu.matmul %1, %3, %cst {dimension_numbers = #tpu.dot_dimension_numbers<[1], [0], [0], [1], [0, 0, 1, 1], [], []>} : vector<64x16xf32>, vector<16x32xf32>, vector<64x32xf32> -> vector<64x32xf32>
    %c0_6 = arith.constant 0 : index
    %c0_7 = arith.constant 0 : index
    %5 = vector.load %arg3[%c0_6, %c0_7] : memref<1x32xf32, #tpu.memory_space<vmem>>, vector<1x32xf32>
    %6 = vector.broadcast %5 : vector<1x32xf32> to vector<64x32xf32>
    %7 = arith.addf %4, %6 : vector<64x32xf32>
    %cst_8 = arith.constant dense<0.000000e+00> : vector<64x16xf32>
    %8 = tpu.matmul %0, %1, %cst_8 {dimension_numbers = #tpu.dot_dimension_numbers<[1], [0], [0], [1], [0, 0, 1, 1], [], []>} : vector<64x64xf32>, vector<64x16xf32>, vector<64x16xf32> -> vector<64x16xf32>
    %c1 = arith.constant 1 : index
    %c0_9 = arith.constant 0 : index
    %c0_10 = arith.constant 0 : index
    %9 = vector.load %arg2[%c1, %c0_9, %c0_10] : memref<3x16x32xf32, #tpu.memory_space<vmem>>, vector<1x16x32xf32>
    %10 = vector.shape_cast %9 : vector<1x16x32xf32> to vector<16x32xf32>
    %cst_11 = arith.constant dense<0.000000e+00> : vector<64x32xf32>
    %11 = tpu.matmul %8, %10, %cst_11 {dimension_numbers = #tpu.dot_dimension_numbers<[1], [0], [0], [1], [0, 0, 1, 1], [], []>} : vector<64x16xf32>, vector<16x32xf32>, vector<64x32xf32> -> vector<64x32xf32>
    %12 = arith.addf %7, %11 : vector<64x32xf32>
    %cst_12 = arith.constant dense<0.000000e+00> : vector<64x16xf32>
    %13 = tpu.matmul %0, %8, %cst_12 {dimension_numbers = #tpu.dot_dimension_numbers<[1], [0], [0], [1], [0, 0, 1, 1], [], []>} : vector<64x64xf32>, vector<64x16xf32>, vector<64x16xf32> -> vector<64x16xf32>
    %cst_13 = arith.constant 2.000000e+00 : f32
    %14 = vector.broadcast %cst_13 : f32 to vector<64x16xf32>
    %15 = arith.mulf %14, %13 : vector<64x16xf32>
    %16 = arith.subf %15, %1 : vector<64x16xf32>
    %c2 = arith.constant 2 : index
    %c0_14 = arith.constant 0 : index
    %c0_15 = arith.constant 0 : index
    %17 = vector.load %arg2[%c2, %c0_14, %c0_15] : memref<3x16x32xf32, #tpu.memory_space<vmem>>, vector<1x16x32xf32>
    %18 = vector.shape_cast %17 : vector<1x16x32xf32> to vector<16x32xf32>
    %cst_16 = arith.constant dense<0.000000e+00> : vector<64x32xf32>
    %19 = tpu.matmul %16, %18, %cst_16 {dimension_numbers = #tpu.dot_dimension_numbers<[1], [0], [0], [1], [0, 0, 1, 1], [], []>} : vector<64x16xf32>, vector<16x32xf32>, vector<64x32xf32> -> vector<64x32xf32>
    %20 = arith.addf %12, %19 : vector<64x32xf32>
    %c0_17 = arith.constant 0 : index
    %c0_18 = arith.constant 0 : index
    %21 = vector.load %arg4[%c0_17, %c0_18] : memref<64x32xf32, #tpu.memory_space<vmem>>, vector<64x32xf32>
    tpu.vector_store %arg4[%c0_17, %c0_18], %20 {strides = array<i32>} : memref<64x32xf32, #tpu.memory_space<vmem>>, vector<64x32xf32>,
    return
  }
}

</mosaic_0001>

<llo_original>
// kernel: tpu_custom_call.1
$region0: #{tpu_custom_call.1}
  #allocation0 [shape = 'u32[]', space=smem, size = 0x4, offset = 0x4, fixed_abs, tag = 'smem constant byte address 0x4 - core index']
  #allocation1 [shape = 'u32[144,128]{1,0:T(1,128)}', space=vmem, size = 0x12000, scoped, tag = 'internal scratch']
  %s0 = inlined_call_operand.vmem [shape: f32[64,64], index: 0, kind: input, shape index: {}]
  %s1 = inlined_call_operand.vmem [shape: f32[64,16], index: 1, kind: input, shape index: {}]
  %s2 = inlined_call_operand.hbm [shape: f32[3,16,32], index: 2, kind: input, shape index: {}]
  %s3 = inlined_call_operand.vmem [shape: f32[1,32], index: 3, kind: input, shape index: {}]
  %s4 = inlined_call_operand.vmem [shape: f32[64,32], index: 4, kind: output, shape index: {}]
  %s5 = sld [smem:[#allocation0]]
  $region30: #{tpu_custom_call.1} parent=0
    _
  %s7 = ssub.s32 1, %s5
  %s8 = scalar_select 0, %s7, %s5
  $region1: #{tpu_custom_call.1} parent=0
    #allocation2 [shape = 'u8[24576]{0}', space=vmem, size = 0x6000, scoped, tag = 'input window, operand 2, single buffered']
    #allocation3 [shape = 's32[1]{0}', space=sflag, size = 0x4, scoped, tag = 'scoped memory for tpu_custom_call.1']
    %9 = vsyncpa [#allocation3], 0
    // Predicated region
    $region2: #{tpu_custom_call.1} parent=1 // pred_check
      _
    $region3: #{tpu_custom_call.1} parent=1 // pred_check_branch
      %11 = sbr.rel (0) target = $region5
    $region4: #{tpu_custom_call.1} parent=1 // pred_region
      _
    $region5: #{tpu_custom_call.1} parent=1 // pred_fallthru
      _
    // Predicated region
    $region6: #{tpu_custom_call.1} parent=1 // pred_check
      _
    $region7: #{tpu_custom_call.1} parent=1 // pred_check_branch
      %13 = sbr.rel (0) target = $region9
    $region8: #{tpu_custom_call.1} parent=1 // pred_region
      _
    $region9: #{tpu_custom_call.1} parent=1 // pred_fallthru
      _
    // Predicated region
    $region10: #{tpu_custom_call.1} parent=1 // pred_check
      _
    $region11: #{tpu_custom_call.1} parent=1 // pred_check_branch
      %15 = sbr.rel (0) target = $region13
    $region12: #{tpu_custom_call.1} parent=1 // pred_region
      %s17 = ssub.s32 768, 768
      %18 = vsyncadd [#allocation3], %s17
      %s19 = sshll.u32 [#allocation2], 4
      %s20 = int_to_ptr.vmem [resolvable:$true] %s19
      %25 = dma.hbm_to_vmem [thread:$0]  %s2, 768, %s20, [#allocation3], 128, 128, 8
    $region13: #{tpu_custom_call.1} parent=1 // pred_fallthru
      _
    // Predicated region
    $region14: #{tpu_custom_call.1} parent=1 // pred_check
      _
    $region15: #{tpu_custom_call.1} parent=1 // pred_check_branch
      %27 = sbr.rel (0) target = $region17
    $region16: #{tpu_custom_call.1} parent=1 // pred_region
      _
    $region17: #{tpu_custom_call.1} parent=1 // pred_fallthru
      _
    // Predicated region
    $region18: #{tpu_custom_call.1} parent=1 // pred_check
      _
    $region19: #{tpu_custom_call.1} parent=1 // pred_check_branch
      %29 = sbr.rel (0) target = $region21
    $region20: #{tpu_custom_call.1} parent=1 // pred_region
      %30 = dma.done [#allocation3], 768
    $region21: #{tpu_custom_call.1} parent=1 // pred_fallthru
      _
    %v31 = vld [vmem:[%s0] sm:$0xff]
    %v32 = vld [vmem:[%s0 + $0x8] sm:$0xff]
    %v33 = vld [vmem:[%s0 + $0x10] sm:$0xff]
    %v34 = vld [vmem:[%s0 + $0x18] sm:$0xff]
    %v35 = vld [vmem:[%s0 + $0x20] sm:$0xff]
    %v36 = vld [vmem:[%s0 + $0x28] sm:$0xff]
    %v37 = vld [vmem:[%s0 + $0x30] sm:$0xff]
    %v38 = vld [vmem:[%s0 + $0x38] sm:$0xff]
    %v39 = vld [vmem:[%s1] sm:$0xff]
    %v40 = vld [vmem:[%s1 + $0x8] sm:$0xff]
    %v41 = vld [vmem:[%s1 + $0x10] sm:$0xff]
    %v42 = vld [vmem:[%s1 + $0x18] sm:$0xff]
    %v43 = vld [vmem:[%s1 + $0x20] sm:$0xff]
    %v44 = vld [vmem:[%s1 + $0x28] sm:$0xff]
    %v45 = vld [vmem:[%s1 + $0x30] sm:$0xff]
    %v46 = vld [vmem:[%s1 + $0x38] sm:$0xff]
    %v47 = vld [vmem:[#allocation2] sm:$0xff]
    %v48 = vld [vmem:[#allocation2 + $0x8] sm:$0xff]
    %v49 = vld [vmem:[%s3] sm:$0x1]
    %v51 = vlaneseq
    %v52 = vshrl.u32 %v51, 7
    %v53 = vsub.s32 0, %v52
    %v54 = vrot.slane %v49, %v53
    %vm56 = vcmask 130048
    %v58 = vsel %vm56, %v39, 0
    %v61 = vsel %vm56, %v40, 0
    %v64 = vsel %vm56, %v41, 0
    %v67 = vsel %vm56, %v42, 0
    %v70 = vsel %vm56, %v43, 0
    %v73 = vsel %vm56, %v44, 0
    %v76 = vsel %vm56, %v45, 0
    %v79 = vsel %vm56, %v46, 0
    %81 = vmatprep.subr.mxu0 0.0
    %82 = vmatpush1.msra.mxu0 0.0
    %83 = vmatprep.subr.mxu0 0.0
    %84 = vmatpush1.msra.mxu0 0.0
    %85 = vmatprep.subr.mxu0 0.0
    %86 = vmatpush1.msra.mxu0 0.0
    %87 = vmatprep.subr.mxu0 0.0
    %88 = vmatpush1.msra.mxu0 0.0
    %89 = vmatprep.subr.mxu0 0.0
    %90 = vmatpush1.msra.mxu0 0.0
    %91 = vmatprep.subr.mxu0 0.0
    %92 = vmatpush1.msra.mxu0 0.0
    %93 = vmatprep.subr.mxu0 0.0
    %94 = vmatpush1.msra.mxu0 0.0
    %95 = vmatprep.subr.mxu0 0.0
    %96 = vmatpush1.msra.mxu0 0.0
    %97 = vmatprep.subr.mxu0 0.0
    %98 = vmatpush1.msra.mxu0 0.0
    %99 = vmatprep.subr.mxu0 0.0
    %100 = vmatpush1.msra.mxu0 0.0
    %101 = vmatprep.subr.mxu0 0.0
    %102 = vmatpush1.msra.mxu0 0.0
    %103 = vmatprep.subr.mxu0 0.0
    %104 = vmatpush1.msra.mxu0 0.0
    %105 = vmatprep.subr.mxu0 0.0
    %106 = vmatpush1.msra.mxu0 0.0
    %107 = vmatprep.subr.mxu0 0.0
    %108 = vmatpush1.msra.mxu0 0.0
    %109 = vmatprep.subr.mxu0 0.0
    %110 = vmatpush1.msra.mxu0 %v48
    %111 = vmatprep.subr.mxu0 0.0
    %112 = vmatpush1.msra.mxu0 %v47
    %113 = vmatprep.subr.mxu0 0.0
    %114 = vmatpush2.msra.mxu0 0.0
    %115 = vmatprep.subr.mxu0 0.0
    %116 = vmatpush2.msra.mxu0 0.0
    %117 = vmatprep.subr.mxu0 0.0
    %118 = vmatpush2.msra.mxu0 0.0
    %119 = vmatprep.subr.mxu0 0.0
    %120 = vmatpush2.msra.mxu0 0.0
    %121 = vmatprep.subr.mxu0 0.0
    %122 = vmatpush2.msra.mxu0 0.0
    %123 = vmatprep.subr.mxu0 0.0
    %124 = vmatpush2.msra.mxu0 0.0
    %125 = vmatprep.subr.mxu0 0.0
    %126 = vmatpush2.msra.mxu0 0.0
    %127 = vmatprep.subr.mxu0 0.0
    %128 = vmatpush2.msra.mxu0 0.0
    %129 = vmatprep.subr.mxu0 0.0
    %130 = vmatpush2.msra.mxu0 0.0
    %131 = vmatprep.subr.mxu0 0.0
    %132 = vmatpush2.msra.mxu0 0.0
    %133 = vmatprep.subr.mxu0 0.0
    %134 = vmatpush2.msra.mxu0 0.0
    %135 = vmatprep.subr.mxu0 0.0
    %136 = vmatpush2.msra.mxu0 0.0
    %137 = vmatprep.subr.mxu0 0.0
    %138 = vmatpush2.msra.mxu0 0.0
    %139 = vmatprep.subr.mxu0 0.0
    %140 = vmatpush2.msra.mxu0 0.0
    %141 = vmatprep.subr.mxu0 0.0
    %142 = vmatpush2.msra.mxu0 0.0
    %143 = vmatprep.subr.mxu0 0.0
    %144 = vmatpush2.msra.mxu0 0.0
    %145 = vmatprep.mubr.f32.mxu0 0.0
    %146 = vmatmul.mubr.f32.gmra.mxu0 %v58
    %v147 = vpop.f32.mrf.mxu0
    %v148 = vadd.f32 %v54, %v147
    %v149 = vpop.f32.mrf.mxu0
    %150 = vmatprep.mubr.f32.mxu0 0.0
    %151 = vmatmul.mubr.f32.gmra.mxu0 %v61
    %v152 = vpop.f32.mrf.mxu0
    %v153 = vadd.f32 %v54, %v152
    %v154 = vpop.f32.mrf.mxu0
    %155 = vmatprep.mubr.f32.mxu0 0.0
    %156 = vmatmul.mubr.f32.gmra.mxu0 %v64
    %v157 = vpop.f32.mrf.mxu0
    %v158 = vadd.f32 %v54, %v157
    %v159 = vpop.f32.mrf.mxu0
    %160 = vmatprep.mubr.f32.mxu0 0.0
    %161 = vmatmul.mubr.f32.gmra.mxu0 %v67
    %v162 = vpop.f32.mrf.mxu0
    %v163 = vadd.f32 %v54, %v162
    %v164 = vpop.f32.mrf.mxu0
    %165 = vmatprep.mubr.f32.mxu0 0.0
    %166 = vmatmul.mubr.f32.gmra.mxu0 %v70
    %v167 = vpop.f32.mrf.mxu0
    %v168 = vadd.f32 %v54, %v167
    %v169 = vpop.f32.mrf.mxu0
    %170 = vmatprep.mubr.f32.mxu0 0.0
    %171 = vmatmul.mubr.f32.gmra.mxu0 %v73
    %v172 = vpop.f32.mrf.mxu0
    %v173 = vadd.f32 %v54, %v172
    %v174 = vpop.f32.mrf.mxu0
    %175 = vmatprep.mubr.f32.mxu0 0.0
    %176 = vmatmul.mubr.f32.gmra.mxu0 %v76
    %v177 = vpop.f32.mrf.mxu0
    %v178 = vadd.f32 %v54, %v177
    %v179 = vpop.f32.mrf.mxu0
    %180 = vmatprep.mubr.f32.mxu0 0.0
    %181 = vmatmul.mubr.f32.gmra.mxu0 %v79
    %v182 = vpop.f32.mrf.mxu0
    %v183 = vadd.f32 %v54, %v182
    %v184 = vpop.f32.mrf.mxu0
    %185 = vdwg.mxu0
    %vm186 = vcmask 523264
    %v188 = vsel %vm186, %v31, 0
    %v191 = vsel %vm186, %v32, 0
    %v194 = vsel %vm186, %v33, 0
    %v197 = vsel %vm186, %v34, 0
    %v200 = vsel %vm186, %v35, 0
    %v203 = vsel %vm186, %v36, 0
    %v206 = vsel %vm186, %v37, 0
    %v209 = vsel %vm186, %v38, 0
    %211 = vmatprep.subr.mxu0 0.0
    %212 = vmatpush1.msra.mxu0 0.0
    %213 = vmatprep.subr.mxu0 0.0
    %214 = vmatpush1.msra.mxu0 0.0
    %215 = vmatprep.subr.mxu0 0.0
    %216 = vmatpush1.msra.mxu0 0.0
    %217 = vmatprep.subr.mxu0 0.0
    %218 = vmatpush1.msra.mxu0 0.0
    %219 = vmatprep.subr.mxu0 0.0
    %220 = vmatpush1.msra.mxu0 0.0
    %221 = vmatprep.subr.mxu0 0.0
    %222 = vmatpush1.msra.mxu0 0.0
    %223 = vmatprep.subr.mxu0 0.0
    %224 = vmatpush1.msra.mxu0 0.0
    %225 = vmatprep.subr.mxu0 0.0
    %226 = vmatpush1.msra.mxu0 0.0
    %227 = vmatprep.subr.mxu0 0.0
    %228 = vmatpush1.msra.mxu0 %v46
    %229 = vmatprep.subr.mxu0 0.0
    %230 = vmatpush1.msra.mxu0 %v45
    %231 = vmatprep.subr.mxu0 0.0
    %232 = vmatpush1.msra.mxu0 %v44
    %233 = vmatprep.subr.mxu0 0.0
    %234 = vmatpush1.msra.mxu0 %v43
    %235 = vmatprep.subr.mxu0 0.0
    %236 = vmatpush1.msra.mxu0 %v42
    %237 = vmatprep.subr.mxu0 0.0
    %238 = vmatpush1.msra.mxu0 %v41
    %239 = vmatprep.subr.mxu0 0.0
    %240 = vmatpush1.msra.mxu0 %v40
    %241 = vmatprep.subr.mxu0 0.0
    %242 = vmatpush1.msra.mxu0 %v39
    %243 = vmatprep.subr.mxu0 0.0
    %244 = vmatpush2.msra.mxu0 0.0
    %245 = vmatprep.subr.mxu0 0.0
    %246 = vmatpush2.msra.mxu0 0.0
    %247 = vmatprep.subr.mxu0 0.0
    %248 = vmatpush2.msra.mxu0 0.0
    %249 = vmatprep.subr.mxu0 0.0
    %250 = vmatpush2.msra.mxu0 0.0
    %251 = vmatprep.subr.mxu0 0.0
    %252 = vmatpush2.msra.mxu0 0.0
    %253 = vmatprep.subr.mxu0 0.0
    %254 = vmatpush2.msra.mxu0 0.0
    %255 = vmatprep.subr.mxu0 0.0
    %256 = vmatpush2.msra.mxu0 0.0
    %257 = vmatprep.subr.mxu0 0.0
    %258 = vmatpush2.msra.mxu0 0.0
    %259 = vmatprep.subr.mxu0 0.0
    %260 = vmatpush2.msra.mxu0 0.0
    %261 = vmatprep.subr.mxu0 0.0
    %262 = vmatpush2.msra.mxu0 0.0
    %263 = vmatprep.subr.mxu0 0.0
    %264 = vmatpush2.msra.mxu0 0.0
    %265 = vmatprep.subr.mxu0 0.0
    %266 = vmatpush2.msra.mxu0 0.0
    %267 = vmatprep.subr.mxu0 0.0
    %268 = vmatpush2.msra.mxu0 0.0
    %269 = vmatprep.subr.mxu0 0.0
    %270 = vmatpush2.msra.mxu0 0.0
    %271 = vmatprep.subr.mxu0 0.0
    %272 = vmatpush2.msra.mxu0 0.0
    %273 = vmatprep.subr.mxu0 0.0
    %274 = vmatpush2.msra.mxu0 0.0
    %275 = vmatprep.mubr.f32.mxu0 0.0
    %276 = vmatmul.mubr.f32.gmra.mxu0 %v188
    %v277 = vpop.f32.mrf.mxu0
    %v278 = vadd.f32 0.0, %v277
    %v279 = vpop.f32.mrf.mxu0
    %280 = vmatprep.mubr.f32.mxu0 0.0
    %281 = vmatmul.mubr.f32.gmra.mxu0 %v191
    %v282 = vpop.f32.mrf.mxu0
    %v283 = vadd.f32 0.0, %v282
    %v284 = vpop.f32.mrf.mxu0
    %285 = vmatprep.mubr.f32.mxu0 0.0
    %286 = vmatmul.mubr.f32.gmra.mxu0 %v194
    %v287 = vpop.f32.mrf.mxu0
    %v288 = vadd.f32 0.0, %v287
    %v289 = vpop.f32.mrf.mxu0
    %290 = vmatprep.mubr.f32.mxu0 0.0
    %291 = vmatmul.mubr.f32.gmra.mxu0 %v197
    %v292 = vpop.f32.mrf.mxu0
    %v293 = vadd.f32 0.0, %v292
    %v294 = vpop.f32.mrf.mxu0
    %295 = vmatprep.mubr.f32.mxu0 0.0
    %296 = vmatmul.mubr.f32.gmra.mxu0 %v200
    %v297 = vpop.f32.mrf.mxu0
    %v298 = vadd.f32 0.0, %v297
    %v299 = vpop.f32.mrf.mxu0
    %300 = vmatprep.mubr.f32.mxu0 0.0
    %301 = vmatmul.mubr.f32.gmra.mxu0 %v203
    %v302 = vpop.f32.mrf.mxu0
    %v303 = vadd.f32 0.0, %v302
    %v304 = vpop.f32.mrf.mxu0
    %305 = vmatprep.mubr.f32.mxu0 0.0
    %306 = vmatmul.mubr.f32.gmra.mxu0 %v206
    %v307 = vpop.f32.mrf.mxu0
    %v308 = vadd.f32 0.0, %v307
    %v309 = vpop.f32.mrf.mxu0
    %310 = vmatprep.mubr.f32.mxu0 0.0
    %311 = vmatmul.mubr.f32.gmra.mxu0 %v209
    %v312 = vpop.f32.mrf.mxu0
    %v313 = vadd.f32 0.0, %v312
    %v314 = vpop.f32.mrf.mxu0
    %315 = vdwg.mxu0
    %s316 = scalar_lea.vmem [#allocation2], 16
    %v317 = vld [vmem:[%s316] sm:$0xff]
    %v318 = vld [vmem:[%s316 + $0x8] sm:$0xff]
    %v320 = vsel %vm56, %v278, 0
    %v323 = vsel %vm56, %v283, 0
    %v326 = vsel %vm56, %v288, 0
    %v329 = vsel %vm56, %v293, 0
    %v332 = vsel %vm56, %v298, 0
    %v335 = vsel %vm56, %v303, 0
    %v338 = vsel %vm56, %v308, 0
    %v341 = vsel %vm56, %v313, 0
    %343 = vmatprep.subr.mxu0 0.0
    %344 = vmatpush1.msra.mxu0 0.0
    %345 = vmatprep.subr.mxu0 0.0
    %346 = vmatpush1.msra.mxu0 0.0
    %347 = vmatprep.subr.mxu0 0.0
    %348 = vmatpush1.msra.mxu0 0.0
    %349 = vmatprep.subr.mxu0 0.0
    %350 = vmatpush1.msra.mxu0 0.0
    %351 = vmatprep.subr.mxu0 0.0
    %352 = vmatpush1.msra.mxu0 0.0
    %353 = vmatprep.subr.mxu0 0.0
    %354 = vmatpush1.msra.mxu0 0.0
    %355 = vmatprep.subr.mxu0 0.0
    %356 = vmatpush1.msra.mxu0 0.0
    %357 = vmatprep.subr.mxu0 0.0
    %358 = vmatpush1.msra.mxu0 0.0
    %359 = vmatprep.subr.mxu0 0.0
    %360 = vmatpush1.msra.mxu0 0.0
    %361 = vmatprep.subr.mxu0 0.0
    %362 = vmatpush1.msra.mxu0 0.0
    %363 = vmatprep.subr.mxu0 0.0
    %364 = vmatpush1.msra.mxu0 0.0
    %365 = vmatprep.subr.mxu0 0.0
    %366 = vmatpush1.msra.mxu0 0.0
    %367 = vmatprep.subr.mxu0 0.0
    %368 = vmatpush1.msra.mxu0 0.0
    %369 = vmatprep.subr.mxu0 0.0
    %370 = vmatpush1.msra.mxu0 0.0
    %371 = vmatprep.subr.mxu0 0.0
    %372 = vmatpush1.msra.mxu0 %v318
    %373 = vmatprep.subr.mxu0 0.0
    %374 = vmatpush1.msra.mxu0 %v317
    %375 = vmatprep.subr.mxu0 0.0
    %376 = vmatpush2.msra.mxu0 0.0
    %377 = vmatprep.subr.mxu0 0.0
    %378 = vmatpush2.msra.mxu0 0.0
    %379 = vmatprep.subr.mxu0 0.0
    %380 = vmatpush2.msra.mxu0 0.0
    %381 = vmatprep.subr.mxu0 0.0
    %382 = vmatpush2.msra.mxu0 0.0
    %383 = vmatprep.subr.mxu0 0.0
    %384 = vmatpush2.msra.mxu0 0.0
    %385 = vmatprep.subr.mxu0 0.0
    %386 = vmatpush2.msra.mxu0 0.0
    %387 = vmatprep.subr.mxu0 0.0
    %388 = vmatpush2.msra.mxu0 0.0
    %389 = vmatprep.subr.mxu0 0.0
    %390 = vmatpush2.msra.mxu0 0.0
    %391 = vmatprep.subr.mxu0 0.0
    %392 = vmatpush2.msra.mxu0 0.0
    %393 = vmatprep.subr.mxu0 0.0
    %394 = vmatpush2.msra.mxu0 0.0
    %395 = vmatprep.subr.mxu0 0.0
    %396 = vmatpush2.msra.mxu0 0.0
    %397 = vmatprep.subr.mxu0 0.0
    %398 = vmatpush2.msra.mxu0 0.0
    %399 = vmatprep.subr.mxu0 0.0
    %400 = vmatpush2.msra.mxu0 0.0
    %401 = vmatprep.subr.mxu0 0.0
    %402 = vmatpush2.msra.mxu0 0.0
    %403 = vmatprep.subr.mxu0 0.0
    %404 = vmatpush2.msra.mxu0 0.0
    %405 = vmatprep.subr.mxu0 0.0
    %406 = vmatpush2.msra.mxu0 0.0
    %407 = vmatprep.mubr.f32.mxu0 0.0
    %408 = vmatmul.mubr.f32.gmra.mxu0 %v320
    %v409 = vpop.f32.mrf.mxu0
    %v410 = vadd.f32 0.0, %v409
    %v411 = vpop.f32.mrf.mxu0
    %412 = vmatprep.mubr.f32.mxu0 0.0
    %413 = vmatmul.mubr.f32.gmra.mxu0 %v323
    %v414 = vpop.f32.mrf.mxu0
    %v415 = vadd.f32 0.0, %v414
    %v416 = vpop.f32.mrf.mxu0
    %417 = vmatprep.mubr.f32.mxu0 0.0
    %418 = vmatmul.mubr.f32.gmra.mxu0 %v326
    %v419 = vpop.f32.mrf.mxu0
    %v420 = vadd.f32 0.0, %v419
    %v421 = vpop.f32.mrf.mxu0
    %422 = vmatprep.mubr.f32.mxu0 0.0
    %423 = vmatmul.mubr.f32.gmra.mxu0 %v329
    %v424 = vpop.f32.mrf.mxu0
    %v425 = vadd.f32 0.0, %v424
    %v426 = vpop.f32.mrf.mxu0
    %427 = vmatprep.mubr.f32.mxu0 0.0
    %428 = vmatmul.mubr.f32.gmra.mxu0 %v332
    %v429 = vpop.f32.mrf.mxu0
    %v430 = vadd.f32 0.0, %v429
    %v431 = vpop.f32.mrf.mxu0
    %432 = vmatprep.mubr.f32.mxu0 0.0
    %433 = vmatmul.mubr.f32.gmra.mxu0 %v335
    %v434 = vpop.f32.mrf.mxu0
    %v435 = vadd.f32 0.0, %v434
    %v436 = vpop.f32.mrf.mxu0
    %437 = vmatprep.mubr.f32.mxu0 0.0
    %438 = vmatmul.mubr.f32.gmra.mxu0 %v338
    %v439 = vpop.f32.mrf.mxu0
    %v440 = vadd.f32 0.0, %v439
    %v441 = vpop.f32.mrf.mxu0
    %442 = vmatprep.mubr.f32.mxu0 0.0
    %443 = vmatmul.mubr.f32.gmra.mxu0 %v341
    %v444 = vpop.f32.mrf.mxu0
    %v445 = vadd.f32 0.0, %v444
    %v446 = vpop.f32.mrf.mxu0
    %447 = vdwg.mxu0
    %v448 = vadd.f32 %v148, %v410
    %v449 = vadd.f32 %v153, %v415
    %v450 = vadd.f32 %v158, %v420
    %v451 = vadd.f32 %v163, %v425
    %v452 = vadd.f32 %v168, %v430
    %v453 = vadd.f32 %v173, %v435
    %v454 = vadd.f32 %v178, %v440
    %v455 = vadd.f32 %v183, %v445
    %456 = vmatprep.subr.mxu0 0.0
    %457 = vmatpush1.msra.mxu0 0.0
    %458 = vmatprep.subr.mxu0 0.0
    %459 = vmatpush1.msra.mxu0 0.0
    %460 = vmatprep.subr.mxu0 0.0
    %461 = vmatpush1.msra.mxu0 0.0
    %462 = vmatprep.subr.mxu0 0.0
    %463 = vmatpush1.msra.mxu0 0.0
    %464 = vmatprep.subr.mxu0 0.0
    %465 = vmatpush1.msra.mxu0 0.0
    %466 = vmatprep.subr.mxu0 0.0
    %467 = vmatpush1.msra.mxu0 0.0
    %468 = vmatprep.subr.mxu0 0.0
    %469 = vmatpush1.msra.mxu0 0.0
    %470 = vmatprep.subr.mxu0 0.0
    %471 = vmatpush1.msra.mxu0 0.0
    %472 = vmatprep.subr.mxu0 0.0
    %473 = vmatpush1.msra.mxu0 %v313
    %474 = vmatprep.subr.mxu0 0.0
    %475 = vmatpush1.msra.mxu0 %v308
    %476 = vmatprep.subr.mxu0 0.0
    %477 = vmatpush1.msra.mxu0 %v303
    %478 = vmatprep.subr.mxu0 0.0
    %479 = vmatpush1.msra.mxu0 %v298
    %480 = vmatprep.subr.mxu0 0.0
    %481 = vmatpush1.msra.mxu0 %v293
    %482 = vmatprep.subr.mxu0 0.0
    %483 = vmatpush1.msra.mxu0 %v288
    %484 = vmatprep.subr.mxu0 0.0
    %485 = vmatpush1.msra.mxu0 %v283
    %486 = vmatprep.subr.mxu0 0.0
    %487 = vmatpush1.msra.mxu0 %v278
    %488 = vmatprep.subr.mxu0 0.0
    %489 = vmatpush2.msra.mxu0 0.0
    %490 = vmatprep.subr.mxu0 0.0
    %491 = vmatpush2.msra.mxu0 0.0
    %492 = vmatprep.subr.mxu0 0.0
    %493 = vmatpush2.msra.mxu0 0.0
    %494 = vmatprep.subr.mxu0 0.0
    %495 = vmatpush2.msra.mxu0 0.0
    %496 = vmatprep.subr.mxu0 0.0
    %497 = vmatpush2.msra.mxu0 0.0
    %498 = vmatprep.subr.mxu0 0.0
    %499 = vmatpush2.msra.mxu0 0.0
    %500 = vmatprep.subr.mxu0 0.0
    %501 = vmatpush2.msra.mxu0 0.0
    %502 = vmatprep.subr.mxu0 0.0
    %503 = vmatpush2.msra.mxu0 0.0
    %504 = vmatprep.subr.mxu0 0.0
    %505 = vmatpush2.msra.mxu0 0.0
    %506 = vmatprep.subr.mxu0 0.0
    %507 = vmatpush2.msra.mxu0 0.0
    %508 = vmatprep.subr.mxu0 0.0
    %509 = vmatpush2.msra.mxu0 0.0
    %510 = vmatprep.subr.mxu0 0.0
    %511 = vmatpush2.msra.mxu0 0.0
    %512 = vmatprep.subr.mxu0 0.0
    %513 = vmatpush2.msra.mxu0 0.0
    %514 = vmatprep.subr.mxu0 0.0
    %515 = vmatpush2.msra.mxu0 0.0
    %516 = vmatprep.subr.mxu0 0.0
    %517 = vmatpush2.msra.mxu0 0.0
    %518 = vmatprep.subr.mxu0 0.0
    %519 = vmatpush2.msra.mxu0 0.0
    %520 = vmatprep.mubr.f32.mxu0 0.0
    %521 = vmatmul.mubr.f32.gmra.mxu0 %v188
    %v522 = vpop.f32.mrf.mxu0
    %v523 = vadd.f32 0.0, %v522
    %v524 = vpop.f32.mrf.mxu0
    %525 = vmatprep.mubr.f32.mxu0 0.0
    %526 = vmatmul.mubr.f32.gmra.mxu0 %v191
    %v527 = vpop.f32.mrf.mxu0
    %v528 = vadd.f32 0.0, %v527
    %v529 = vpop.f32.mrf.mxu0
    %530 = vmatprep.mubr.f32.mxu0 0.0
    %531 = vmatmul.mubr.f32.gmra.mxu0 %v194
    %v532 = vpop.f32.mrf.mxu0
    %v533 = vadd.f32 0.0, %v532
    %v534 = vpop.f32.mrf.mxu0
    %535 = vmatprep.mubr.f32.mxu0 0.0
    %536 = vmatmul.mubr.f32.gmra.mxu0 %v197
    %v537 = vpop.f32.mrf.mxu0
    %v538 = vadd.f32 0.0, %v537
    %v539 = vpop.f32.mrf.mxu0
    %540 = vmatprep.mubr.f32.mxu0 0.0
    %541 = vmatmul.mubr.f32.gmra.mxu0 %v200
    %v542 = vpop.f32.mrf.mxu0
    %v543 = vadd.f32 0.0, %v542
    %v544 = vpop.f32.mrf.mxu0
    %545 = vmatprep.mubr.f32.mxu0 0.0
    %546 = vmatmul.mubr.f32.gmra.mxu0 %v203
    %v547 = vpop.f32.mrf.mxu0
    %v548 = vadd.f32 0.0, %v547
    %v549 = vpop.f32.mrf.mxu0
    %550 = vmatprep.mubr.f32.mxu0 0.0
    %551 = vmatmul.mubr.f32.gmra.mxu0 %v206
    %v552 = vpop.f32.mrf.mxu0
    %v553 = vadd.f32 0.0, %v552
    %v554 = vpop.f32.mrf.mxu0
    %555 = vmatprep.mubr.f32.mxu0 0.0
    %556 = vmatmul.mubr.f32.gmra.mxu0 %v209
    %v557 = vpop.f32.mrf.mxu0
    %v558 = vadd.f32 0.0, %v557
    %v559 = vpop.f32.mrf.mxu0
    %560 = vdwg.mxu0
    %v561 = vmul.f32 %v523, 2.0
    %v562 = vmul.f32 %v528, 2.0
    %v563 = vmul.f32 %v533, 2.0
    %v564 = vmul.f32 %v538, 2.0
    %v565 = vmul.f32 %v543, 2.0
    %v566 = vmul.f32 %v548, 2.0
    %v567 = vmul.f32 %v553, 2.0
    %v568 = vmul.f32 %v558, 2.0
    %v569 = vsub.f32 %v561, %v39
    %v570 = vsub.f32 %v562, %v40
    %v571 = vsub.f32 %v563, %v41
    %v572 = vsub.f32 %v564, %v42
    %v573 = vsub.f32 %v565, %v43
    %v574 = vsub.f32 %v566, %v44
    %v575 = vsub.f32 %v567, %v45
    %v576 = vsub.f32 %v568, %v46
    %s577 = scalar_lea.vmem [#allocation2], 32
    %v578 = vld [vmem:[%s577] sm:$0xff]
    %v579 = vld [vmem:[%s577 + $0x8] sm:$0xff]
    %v581 = vsel %vm56, %v569, 0
    %v584 = vsel %vm56, %v570, 0
    %v587 = vsel %vm56, %v571, 0
    %v590 = vsel %vm56, %v572, 0
    %v593 = vsel %vm56, %v573, 0
    %v596 = vsel %vm56, %v574, 0
    %v599 = vsel %vm56, %v575, 0
    %v602 = vsel %vm56, %v576, 0
    %604 = vmatprep.subr.mxu0 0.0
    %605 = vmatpush1.msra.mxu0 0.0
    %606 = vmatprep.subr.mxu0 0.0
    %607 = vmatpush1.msra.mxu0 0.0
    %608 = vmatprep.subr.mxu0 0.0
    %609 = vmatpush1.msra.mxu0 0.0
    %610 = vmatprep.subr.mxu0 0.0
    %611 = vmatpush1.msra.mxu0 0.0
    %612 = vmatprep.subr.mxu0 0.0
    %613 = vmatpush1.msra.mxu0 0.0
    %614 = vmatprep.subr.mxu0 0.0
    %615 = vmatpush1.msra.mxu0 0.0
    %616 = vmatprep.subr.mxu0 0.0
    %617 = vmatpush1.msra.mxu0 0.0
    %618 = vmatprep.subr.mxu0 0.0
    %619 = vmatpush1.msra.mxu0 0.0
    %620 = vmatprep.subr.mxu0 0.0
    %621 = vmatpush1.msra.mxu0 0.0
    %622 = vmatprep.subr.mxu0 0.0
    %623 = vmatpush1.msra.mxu0 0.0
    %624 = vmatprep.subr.mxu0 0.0
    %625 = vmatpush1.msra.mxu0 0.0
    %626 = vmatprep.subr.mxu0 0.0
    %627 = vmatpush1.msra.mxu0 0.0
    %628 = vmatprep.subr.mxu0 0.0
    %629 = vmatpush1.msra.mxu0 0.0
    %630 = vmatprep.subr.mxu0 0.0
    %631 = vmatpush1.msra.mxu0 0.0
    %632 = vmatprep.subr.mxu0 0.0
    %633 = vmatpush1.msra.mxu0 %v579
    %634 = vmatprep.subr.mxu0 0.0
    %635 = vmatpush1.msra.mxu0 %v578
    %636 = vmatprep.subr.mxu0 0.0
    %637 = vmatpush2.msra.mxu0 0.0
    %638 = vmatprep.subr.mxu0 0.0
    %639 = vmatpush2.msra.mxu0 0.0
    %640 = vmatprep.subr.mxu0 0.0
    %641 = vmatpush2.msra.mxu0 0.0
    %642 = vmatprep.subr.mxu0 0.0
    %643 = vmatpush2.msra.mxu0 0.0
    %644 = vmatprep.subr.mxu0 0.0
    %645 = vmatpush2.msra.mxu0 0.0
    %646 = vmatprep.subr.mxu0 0.0
    %647 = vmatpush2.msra.mxu0 0.0
    %648 = vmatprep.subr.mxu0 0.0
    %649 = vmatpush2.msra.mxu0 0.0
    %650 = vmatprep.subr.mxu0 0.0
    %651 = vmatpush2.msra.mxu0 0.0
    %652 = vmatprep.subr.mxu0 0.0
    %653 = vmatpush2.msra.mxu0 0.0
    %654 = vmatprep.subr.mxu0 0.0
    %655 = vmatpush2.msra.mxu0 0.0
    %656 = vmatprep.subr.mxu0 0.0
    %657 = vmatpush2.msra.mxu0 0.0
    %658 = vmatprep.subr.mxu0 0.0
    %659 = vmatpush2.msra.mxu0 0.0
    %660 = vmatprep.subr.mxu0 0.0
    %661 = vmatpush2.msra.mxu0 0.0
    %662 = vmatprep.subr.mxu0 0.0
    %663 = vmatpush2.msra.mxu0 0.0
    %664 = vmatprep.subr.mxu0 0.0
    %665 = vmatpush2.msra.mxu0 0.0
    %666 = vmatprep.subr.mxu0 0.0
    %667 = vmatpush2.msra.mxu0 0.0
    %668 = vmatprep.mubr.f32.mxu0 0.0
    %669 = vmatmul.mubr.f32.gmra.mxu0 %v581
    %v670 = vpop.f32.mrf.mxu0
    %v671 = vadd.f32 0.0, %v670
    %v672 = vpop.f32.mrf.mxu0
    %673 = vmatprep.mubr.f32.mxu0 0.0
    %674 = vmatmul.mubr.f32.gmra.mxu0 %v584
    %v675 = vpop.f32.mrf.mxu0
    %v676 = vadd.f32 0.0, %v675
    %v677 = vpop.f32.mrf.mxu0
    %678 = vmatprep.mubr.f32.mxu0 0.0
    %679 = vmatmul.mubr.f32.gmra.mxu0 %v587
    %v680 = vpop.f32.mrf.mxu0
    %v681 = vadd.f32 0.0, %v680
    %v682 = vpop.f32.mrf.mxu0
    %683 = vmatprep.mubr.f32.mxu0 0.0
    %684 = vmatmul.mubr.f32.gmra.mxu0 %v590
    %v685 = vpop.f32.mrf.mxu0
    %v686 = vadd.f32 0.0, %v685
    %v687 = vpop.f32.mrf.mxu0
    %688 = vmatprep.mubr.f32.mxu0 0.0
    %689 = vmatmul.mubr.f32.gmra.mxu0 %v593
    %v690 = vpop.f32.mrf.mxu0
    %v691 = vadd.f32 0.0, %v690
    %v692 = vpop.f32.mrf.mxu0
    %693 = vmatprep.mubr.f32.mxu0 0.0
    %694 = vmatmul.mubr.f32.gmra.mxu0 %v596
    %v695 = vpop.f32.mrf.mxu0
    %v696 = vadd.f32 0.0, %v695
    %v697 = vpop.f32.mrf.mxu0
    %698 = vmatprep.mubr.f32.mxu0 0.0
    %699 = vmatmul.mubr.f32.gmra.mxu0 %v599
    %v700 = vpop.f32.mrf.mxu0
    %v701 = vadd.f32 0.0, %v700
    %v702 = vpop.f32.mrf.mxu0
    %703 = vmatprep.mubr.f32.mxu0 0.0
    %704 = vmatmul.mubr.f32.gmra.mxu0 %v602
    %v705 = vpop.f32.mrf.mxu0
    %v706 = vadd.f32 0.0, %v705
    %v707 = vpop.f32.mrf.mxu0
    %708 = vdwg.mxu0
    %v709 = vadd.f32 %v448, %v671
    %v710 = vadd.f32 %v449, %v676
    %v711 = vadd.f32 %v450, %v681
    %v712 = vadd.f32 %v451, %v686
    %v713 = vadd.f32 %v452, %v691
    %v714 = vadd.f32 %v453, %v696
    %v715 = vadd.f32 %v454, %v701
    %v716 = vadd.f32 %v455, %v706
    %vm717 = vcmask 261120
    %718 = vst.msk [vmem:[%s4] sm:$0xff] %vm717, %v709
    %719 = vst.msk [vmem:[%s4 + $0x8] sm:$0xff] %vm717, %v710
    %720 = vst.msk [vmem:[%s4 + $0x10] sm:$0xff] %vm717, %v711
    %721 = vst.msk [vmem:[%s4 + $0x18] sm:$0xff] %vm717, %v712
    %722 = vst.msk [vmem:[%s4 + $0x20] sm:$0xff] %vm717, %v713
    %723 = vst.msk [vmem:[%s4 + $0x28] sm:$0xff] %vm717, %v714
    %724 = vst.msk [vmem:[%s4 + $0x30] sm:$0xff] %vm717, %v715
    %725 = vst.msk [vmem:[%s4 + $0x38] sm:$0xff] %vm717, %v716
    // Predicated region
    $region22: #{tpu_custom_call.1} parent=1 // pred_check
      _
    $region23: #{tpu_custom_call.1} parent=1 // pred_check_branch
      %727 = sbr.rel (0) target = $region25
    $region24: #{tpu_custom_call.1} parent=1 // pred_region
      _
    $region25: #{tpu_custom_call.1} parent=1 // pred_fallthru
      _
    // Predicated region
    $region26: #{tpu_custom_call.1} parent=1 // pred_check
      _
    $region27: #{tpu_custom_call.1} parent=1 // pred_check_branch
      %729 = sbr.rel (0) target = $region29
    $region28: #{tpu_custom_call.1} parent=1 // pred_region
      _
    $region29: #{tpu_custom_call.1} parent=1 // pred_fallthru
      _
    %730 = vsyncpa [#allocation3], 1

</llo_original>
